<compile_context>
chip_gen: v7x
topology: tpu7x:2x2x1
jax: 0.10.0
libtpu: 0.0.40
codegen_flags: <defaults>
</compile_context>

<pallas_src>
import functools
import math

import jax
import jax.numpy as jnp
from jax.experimental import pallas as pl
from jax.experimental.pallas import tpu as pltpu


def _attention_aggregator_kernel(
    x_ref,       # (BB*Tp, E)        flattened, padded [cls; x; pad] rows
    wqkv_ref,    # (E, 3E)           fused q|k|v projection (q slice pre-scaled)
    bqkv_ref,    # (1, 3E)
    wo_ref,      # (E, E)            out_proj weight, transposed
    bo_ref,      # (1, E)
    mask_ref,    # (BB*Tp, BB*Tp)    block-diagonal additive mask (0 / -1e30)
    x_out_ref,   # (BB*Tp, E)        out: attention block output
    attn_ref,    # (BB*Tp, BB*Tp)    out: full softmax slab (lane-dense)
    *, E,
):
    x = x_ref[...]                                                   # (128, 32)

    # Fused QKV projection: single MXU matmul, M=BB*Tp, K=E, N=3E.
    qkv = jnp.dot(x, wqkv_ref[...],
                  preferred_element_type=jnp.float32) + bqkv_ref[...]
    q = qkv[:, 0 * E:1 * E]        # scale already folded into weight/bias
    k = qkv[:, 1 * E:2 * E]
    v = qkv[:, 2 * E:3 * E]

    # One dense (BB*Tp, BB*Tp) score matmul; block-diagonal mask kills
    # cross-batch terms and padded key columns before softmax.
    scores = jnp.einsum("qe,ke->qk", q, k,
                        preferred_element_type=jnp.float32)          # (128,128)
    scores = scores + mask_ref[...]
    scores = scores - jnp.max(scores, axis=-1, keepdims=True)
    p = jnp.exp(scores)
    # Exact reciprocal keeps us within the 1e-4 reference tolerance.
    attn = p * pl.reciprocal(jnp.sum(p, axis=-1, keepdims=True), approx=False)
    attn_ref[...] = attn                                             # dense store

    # Context + MultiheadAttention output projection on the flattened block.
    ctx = jnp.dot(attn, v, preferred_element_type=jnp.float32)       # (128, 32)
    x_out_ref[...] = (jnp.dot(ctx, wo_ref[...],
                              preferred_element_type=jnp.float32) + bo_ref[...])


def attention_aggregator(x, params, *, batch_block=8):
    """x: (B, S, E) float32.  Returns dict matching the PyTorch module."""
    B, S, E = x.shape
    T = S + 1                                # +1 cls token
    Tp = ((T + 7) // 8) * 8                  # pad seq to a multiple of 8 (9 -> 16)
    BB = batch_block                         # BB*Tp = 128 rows/step at defaults
    Bp = ((B + BB - 1) // BB) * BB
    G = Bp // BB                             # grid length (2 at defaults; >=2 keeps
                                             # both v7x TensorCores busy)
    N = BB * Tp

    # --- glue in plain JAX: cls concat + batch/seq padding ---
    cls_tok = jnp.broadcast_to(params["cls_token"], (B, 1, E))
    x_cat = jnp.concatenate([cls_tok, x], axis=1)                    # (B, T, E)
    x_pad = jnp.pad(x_cat, ((0, Bp - B), (0, Tp - T), (0, 0)))       # (Bp, Tp, E)
    x_flat = x_pad.reshape(Bp * Tp, E)                               # lane-dense slab

    # Fused, pre-transposed QKV weight; 1/sqrt(head_dim) folded into q slice
    # (num_heads = 1 -> head_dim == E).
    scale = 1.0 / math.sqrt(E)
    in_w = params["in_proj_weight"]                                  # (3E, E)
    in_b = params["in_proj_bias"]                                    # (3E,)
    w_qkv = jnp.concatenate(
        [in_w[0 * E:1 * E].T * scale, in_w[1 * E:2 * E].T, in_w[2 * E:3 * E].T],
        axis=1)                                                      # (E, 3E)
    b_qkv = jnp.concatenate(
        [in_b[0 * E:1 * E] * scale, in_b[1 * E:2 * E], in_b[2 * E:3 * E]]
    ).reshape(1, 3 * E)
    wo = params["out_proj_weight"].T                                 # (E, E)
    bo = params["out_proj_bias"].reshape(1, E)

    # Block-diagonal additive mask (same for every grid step): row i may only
    # attend to keys in its own Tp-block AND only to real (t < T) key columns.
    row_blk = (jnp.arange(N) // Tp)[:, None]
    col_blk = (jnp.arange(N) // Tp)[None, :]
    col_tok = (jnp.arange(N) % Tp)[None, :]
    valid = (row_blk == col_blk) & (col_tok < T)
    mask = jnp.where(valid, 0.0, -1e30).astype(jnp.float32)          # (N, N)

    kernel = functools.partial(_attention_aggregator_kernel, E=E)
    bcast = lambda shape: pl.BlockSpec(shape, lambda i: (0,) * len(shape))

    x_out_flat, attn_full = pl.pallas_call(
        kernel,
        out_shape=(
            jax.ShapeDtypeStruct((Bp * Tp, E), jnp.float32),
            jax.ShapeDtypeStruct((Bp * Tp, N), jnp.float32),
        ),
        grid_spec=pltpu.PrefetchScalarGridSpec(
            num_scalar_prefetch=0,
            grid=(G,),
            in_specs=[
                pl.BlockSpec((N, E), lambda i: (i, 0)),              # x block
                bcast((E, 3 * E)),                                   # w_qkv
                bcast((1, 3 * E)),                                   # b_qkv
                bcast((E, E)),                                       # wo
                bcast((1, E)),                                       # bo
                bcast((N, N)),                                       # mask
            ],
            out_specs=[
                pl.BlockSpec((N, E), lambda i: (i, 0)),              # x_out
                pl.BlockSpec((N, N), lambda i: (i, 0)),              # attn slab
            ],
        ),
        compiler_params=pltpu.CompilerParams(dimension_semantics=("parallel",)),
    )(x_flat, w_qkv, b_qkv, wo, bo, mask)

    # --- unpack in plain JAX ---
    x_out = x_out_flat.reshape(Bp, Tp, E)[:B, :T, :]                 # (B, T, E)

    attn_r = attn_full.reshape(G, BB, Tp, BB, Tp)
    idx = jnp.arange(BB)
    attn_diag = attn_r[:, idx, :, idx, :]                            # (BB, G, Tp, Tp)
    attn_diag = jnp.transpose(attn_diag, (1, 0, 2, 3)).reshape(Bp, Tp, Tp)
    attn_weights = attn_diag[:B, None, :T, :T]                       # (B, 1, T, T)

    # Final linear head on the cls-token row — tiny, left to XLA (avoids a
    # width-1 MXU matmul / masked store in-kernel).
    final = x_out[:, 0, :] @ params["output_weight"].T + params["output_bias"]

    return {"output": final, "x_out": x_out, "attn_weights": attn_weights}


def _reference(x, params):
    """Plain-JAX reference mirroring PyTorch MultiheadAttention (num_heads=1)."""
    B, S, E = x.shape
    cls_tok = jnp.broadcast_to(params["cls_token"], (B, 1, E))
    xc = jnp.concatenate([cls_tok, x], axis=1)
    in_w, in_b = params["in_proj_weight"], params["in_proj_bias"]
    q = xc @ in_w[:E].T + in_b[:E]
    k = xc @ in_w[E:2 * E].T + in_b[E:2 * E]
    v = xc @ in_w[2 * E:].T + in_b[2 * E:]
    scores = jnp.einsum("bqe,bke->bqk", q / math.sqrt(E), k)
    attn = jax.nn.softmax(scores, axis=-1)
    ctx = jnp.einsum("bqk,bke->bqe", attn, v)
    x_out = ctx @ params["out_proj_weight"].T + params["out_proj_bias"]
    final = x_out[:, 0, :] @ params["output_weight"].T + params["output_bias"]
    return {"output": final, "x_out": x_out, "attn_weights": attn[:, None, :, :]}


if __name__ == "__main__":
    B, S, E = 16, 8, 32  # batch, seq, embed_dim; num_heads = 1

    key = jax.random.PRNGKey(0)
    keys = jax.random.split(key, 8)
    params = {
        "cls_token": jax.random.normal(keys[0], (1, 1, E), jnp.float32),
        "in_proj_weight": jax.random.normal(keys[1], (3 * E, E), jnp.float32) * 0.1,
        "in_proj_bias": jax.random.normal(keys[2], (3 * E,), jnp.float32) * 0.1,
        "out_proj_weight": jax.random.normal(keys[3], (E, E), jnp.float32) * 0.1,
        "out_proj_bias": jax.random.normal(keys[4], (E,), jnp.float32) * 0.1,
        "output_weight": jax.random.normal(keys[5], (1, E), jnp.float32) * 0.1,
        "output_bias": jax.random.normal(keys[6], (1,), jnp.float32) * 0.1,
    }
    x = jax.random.normal(keys[7], (B, S, E), jnp.float32)

    out = attention_aggregator(x, params, batch_block=8)
    jax.block_until_ready(out)

    ref = _reference(x, params)
    for name in ("output", "x_out", "attn_weights"):
        err = float(jnp.max(jnp.abs(out[name] - ref[name])))
        assert err < 1e-4, f"{name} mismatch: {err}"

    print("KERNEL_OK")
</pallas_src>

<mosaic_0001>
module attributes {stable_mosaic.version = 11 : i64} {
  func.func @_attention_aggregator_kernel(%arg0: i32, %arg1: memref<128x32xf32, #tpu.memory_space<vmem>>, %arg2: memref<32x96xf32, #tpu.memory_space<vmem>>, %arg3: memref<1x96xf32, #tpu.memory_space<vmem>>, %arg4: memref<32x32xf32, #tpu.memory_space<vmem>>, %arg5: memref<1x32xf32, #tpu.memory_space<vmem>>, %arg6: memref<128x128xf32, #tpu.memory_space<vmem>>, %arg7: memref<128x32xf32, #tpu.memory_space<vmem>>, %arg8: memref<128x128xf32, #tpu.memory_space<vmem>>) attributes {dimension_semantics = [#tpu.dimension_semantics<parallel>], iteration_bounds = array<i64: 2>, scalar_prefetch = 0 : i64, scratch_operands = 0 : i64, tpu.core_type = #tpu.core_type<tc>, window_params = [{transform_indices = @transform_0, window_bounds = array<i64: 128, 32>}, {pipeline_mode = #tpu.pipeline_mode<synchronous>, transform_indices = @transform_1, window_bounds = array<i64: 32, 96>}, {pipeline_mode = #tpu.pipeline_mode<synchronous>, transform_indices = @transform_2, window_bounds = array<i64: 1, 96>}, {pipeline_mode = #tpu.pipeline_mode<synchronous>, transform_indices = @transform_3, window_bounds = array<i64: 32, 32>}, {pipeline_mode = #tpu.pipeline_mode<synchronous>, transform_indices = @transform_4, window_bounds = array<i64: 1, 32>}, {pipeline_mode = #tpu.pipeline_mode<synchronous>, transform_indices = @transform_5, window_bounds = array<i64: 128, 128>}, {transform_indices = @transform_6, window_bounds = array<i64: 128, 32>}, {transform_indices = @transform_7, window_bounds = array<i64: 128, 128>}]} {
    %c0 = arith.constant 0 : index
    %c0_0 = arith.constant 0 : index
    %0 = vector.load %arg1[%c0, %c0_0] : memref<128x32xf32, #tpu.memory_space<vmem>>, vector<128x32xf32>
    %c0_1 = arith.constant 0 : index
    %c0_2 = arith.constant 0 : index
    %1 = vector.load %arg2[%c0_1, %c0_2] : memref<32x96xf32, #tpu.memory_space<vmem>>, vector<32x96xf32>
    %cst = arith.constant dense<0.000000e+00> : vector<128x96xf32>
    %2 = tpu.matmul %0, %1, %cst {dimension_numbers = #tpu.dot_dimension_numbers<[1], [0], [0], [1], [0, 0, 1, 1], [], []>} : vector<128x32xf32>, vector<32x96xf32>, vector<128x96xf32> -> vector<128x96xf32>
    %c0_3 = arith.constant 0 : index
    %c0_4 = arith.constant 0 : index
    %3 = vector.load %arg3[%c0_3, %c0_4] : memref<1x96xf32, #tpu.memory_space<vmem>>, vector<1x96xf32>
    %4 = vector.broadcast %3 : vector<1x96xf32> to vector<128x96xf32>
    %5 = arith.addf %2, %4 : vector<128x96xf32>
    %6 = vector.extract_strided_slice %5 {offsets = [0, 0], sizes = [128, 32], strides = [1, 1]} : vector<128x96xf32> to vector<128x32xf32>
    %7 = vector.extract_strided_slice %5 {offsets = [0, 32], sizes = [128, 32], strides = [1, 1]} : vector<128x96xf32> to vector<128x32xf32>
    %8 = vector.extract_strided_slice %5 {offsets = [0, 64], sizes = [128, 32], strides = [1, 1]} : vector<128x96xf32> to vector<128x32xf32>
    "tpu.trace_start"() <{level = 10 : i32, message = "qe,ke->qk"}> : () -> ()
    %cst_5 = arith.constant dense<0.000000e+00> : vector<128x128xf32>
    %9 = tpu.matmul %6, %7, %cst_5 {dimension_numbers = #tpu.dot_dimension_numbers<[1], [1], [0], [0], [0, 0, 1, 0], [], []>} : vector<128x32xf32>, vector<128x32xf32>, vector<128x128xf32> -> vector<128x128xf32>
    "tpu.trace_stop"() : () -> ()
    %c0_6 = arith.constant 0 : index
    %c0_7 = arith.constant 0 : index
    %10 = vector.load %arg6[%c0_6, %c0_7] : memref<128x128xf32, #tpu.memory_space<vmem>>, vector<128x128xf32>
    %11 = arith.addf %9, %10 : vector<128x128xf32>
    %cst_8 = arith.constant dense<0xFF800000> : vector<128xf32>
    %12 = vector.multi_reduction <maximumf>, %11, %cst_8 [1] : vector<128x128xf32> to vector<128xf32>
    %13 = vector.shape_cast %12 : vector<128xf32> to vector<128x1xf32>
    %14 = vector.broadcast %13 : vector<128x1xf32> to vector<128x128xf32>
    %15 = arith.subf %11, %14 : vector<128x128xf32>
    %16 = math.exp %15 : vector<128x128xf32>
    %cst_9 = arith.constant dense<0.000000e+00> : vector<128xf32>
    %17 = vector.multi_reduction <add>, %16, %cst_9 [1] : vector<128x128xf32> to vector<128xf32>
    %18 = vector.shape_cast %17 : vector<128xf32> to vector<128x1xf32>
    %19 = tpu.reciprocal %18 : vector<128x1xf32> -> vector<128x1xf32>
    %20 = vector.broadcast %19 : vector<128x1xf32> to vector<128x128xf32>
    %21 = arith.mulf %16, %20 : vector<128x128xf32>
    %c0_10 = arith.constant 0 : index
    %c0_11 = arith.constant 0 : index
    %22 = vector.load %arg8[%c0_10, %c0_11] : memref<128x128xf32, #tpu.memory_space<vmem>>, vector<128x128xf32>
    tpu.vector_store %arg8[%c0_10, %c0_11], %21 {strides = array<i32>} : memref<128x128xf32, #tpu.memory_space<vmem>>, vector<128x128xf32>,
    %cst_12 = arith.constant dense<0.000000e+00> : vector<128x32xf32>
    %23 = tpu.matmul %21, %8, %cst_12 {dimension_numbers = #tpu.dot_dimension_numbers<[1], [0], [0], [1], [0, 0, 1, 1], [], []>} : vector<128x128xf32>, vector<128x32xf32>, vector<128x32xf32> -> vector<128x32xf32>
    %c0_13 = arith.constant 0 : index
    %c0_14 = arith.constant 0 : index
    %24 = vector.load %arg4[%c0_13, %c0_14] : memref<32x32xf32, #tpu.memory_space<vmem>>, vector<32x32xf32>
    %cst_15 = arith.constant dense<0.000000e+00> : vector<128x32xf32>
    %25 = tpu.matmul %23, %24, %cst_15 {dimension_numbers = #tpu.dot_dimension_numbers<[1], [0], [0], [1], [0, 0, 1, 1], [], []>} : vector<128x32xf32>, vector<32x32xf32>, vector<128x32xf32> -> vector<128x32xf32>
    %c0_16 = arith.constant 0 : index
    %c0_17 = arith.constant 0 : index
    %26 = vector.load %arg5[%c0_16, %c0_17] : memref<1x32xf32, #tpu.memory_space<vmem>>, vector<1x32xf32>
    %27 = vector.broadcast %26 : vector<1x32xf32> to vector<128x32xf32>
    %28 = arith.addf %25, %27 : vector<128x32xf32>
    %c0_18 = arith.constant 0 : index
    %c0_19 = arith.constant 0 : index
    %29 = vector.load %arg7[%c0_18, %c0_19] : memref<128x32xf32, #tpu.memory_space<vmem>>, vector<128x32xf32>
    tpu.vector_store %arg7[%c0_18, %c0_19], %28 {strides = array<i32>} : memref<128x32xf32, #tpu.memory_space<vmem>>, vector<128x32xf32>,
    return
  }
  func.func @transform_0(%arg0: i32) -> (i32, i32) {
    %c0_i32 = arith.constant 0 : i32
    %c0_i32_0 = arith.constant 0 : i32
    return %arg0, %c0_i32 : i32, i32
  }
  func.func @transform_1(%arg0: i32) -> (i32, i32) {
    %c0_i32 = arith.constant 0 : i32
    %c0_i32_0 = arith.constant 0 : i32
    %c0_i32_1 = arith.constant 0 : i32
    return %c0_i32, %c0_i32_0 : i32, i32
  }
  func.func @transform_2(%arg0: i32) -> (i32, i32) {
    %c0_i32 = arith.constant 0 : i32
    %c0_i32_0 = arith.constant 0 : i32
    %c0_i32_1 = arith.constant 0 : i32
    return %c0_i32, %c0_i32_0 : i32, i32
  }
  func.func @transform_3(%arg0: i32) -> (i32, i32) {
    %c0_i32 = arith.constant 0 : i32
    %c0_i32_0 = arith.constant 0 : i32
    %c0_i32_1 = arith.constant 0 : i32
    return %c0_i32, %c0_i32_0 : i32, i32
  }
  func.func @transform_4(%arg0: i32) -> (i32, i32) {
    %c0_i32 = arith.constant 0 : i32
    %c0_i32_0 = arith.constant 0 : i32
    %c0_i32_1 = arith.constant 0 : i32
    return %c0_i32, %c0_i32_0 : i32, i32
  }
  func.func @transform_5(%arg0: i32) -> (i32, i32) {
    %c0_i32 = arith.constant 0 : i32
    %c0_i32_0 = arith.constant 0 : i32
    %c0_i32_1 = arith.constant 0 : i32
    return %c0_i32, %c0_i32_0 : i32, i32
  }
  func.func @transform_6(%arg0: i32) -> (i32, i32) {
    %c0_i32 = arith.constant 0 : i32
    %c0_i32_0 = arith.constant 0 : i32
    return %arg0, %c0_i32 : i32, i32
  }
  func.func @transform_7(%arg0: i32) -> (i32, i32) {
    %c0_i32 = arith.constant 0 : i32
    %c0_i32_0 = arith.constant 0 : i32
    return %arg0, %c0_i32 : i32, i32
  }
}

</mosaic_0001>

<llo_original>
// kernel: tpu_custom_call.1
$region0: #{tpu_custom_call.1}
  #allocation0 [shape = 'u32[]', space=smem, size = 0x4, offset = 0x4, fixed_abs, tag = 'smem constant byte address 0x4 - core index']
  #allocation1 [shape = 'u32[144,128]{1,0:T(1,128)}', space=vmem, size = 0x12000, scoped, tag = 'internal scratch']
  %s0 = inlined_call_operand.vmem [shape: f32[256,32], index: 0, kind: input, shape index: {}]
  %s1 = inlined_call_operand.vmem [shape: f32[32,96], index: 1, kind: input, shape index: {}]
  %s2 = inlined_call_operand.vmem [shape: f32[1,96], index: 2, kind: input, shape index: {}]
  %s3 = inlined_call_operand.vmem [shape: f32[32,32], index: 3, kind: input, shape index: {}]
  %s4 = inlined_call_operand.vmem [shape: f32[1,32], index: 4, kind: input, shape index: {}]
  %s5 = inlined_call_operand.vmem [shape: f32[128,128], index: 5, kind: input, shape index: {}]
  %s6 = inlined_call_operand.vmem [shape: f32[256,32], index: 6, kind: output, shape index: {0}]
  %s7 = inlined_call_operand.hbm [shape: f32[256,128], index: 7, kind: output, shape index: {1}]
  %8 = xla_tuple %s6, %s7
  %s9 = sld [smem:[#allocation0]]
  $region65: #{tpu_custom_call.1} parent=0
    _
  %s11 = ssub.s32 1, %s9
  %s12 = scalar_select 0, %s11, %s9
  $region1: #{tpu_custom_call.1} parent=0
    #allocation2 [shape = 'u8[131072]{0}', space=vmem, size = 0x20000, scoped, tag = 'output window, operand 1']
    #allocation3 [shape = 's32[2]{0}', space=sflag, size = 0x8, scoped, tag = 'scoped memory for tpu_custom_call.1']
    %13 = vsyncpa [#allocation3], 0
    %s14 = scalar_lea.sflag [#allocation3], 1
    %15 = vsyncpa %s14, 0
    loop: start=0, step=1, limit=4
    $region2: #{tpu_custom_call.1} parent=1 // loop_pre_header
      _
    $region3: #{tpu_custom_call.1} parent=1 // loop_header
      %s17 = sphi 0, %s21
      %p18 = scmp.ge.s32.totalorder %s17, 4
      %s27 = sphi 0, %s29
      %s30 = sphi 0, %s27
      %s31 = sphi 0, %s30
      %s47 = sphi 0, %s31
      %s51 = sphi 0, %s51
      %s53 = sphi 0, %s51
      %s54 = sphi 0, %s53
      %s68 = sphi 0, %s54
      %s72 = sphi 0, %s72
      %s74 = sphi 0, %s72
      %s75 = sphi 0, %s74
      %s89 = sphi 0, %s75
      %s93 = sphi 0, %s93
      %s95 = sphi 0, %s93
      %s96 = sphi 0, %s95
      %s110 = sphi 0, %s96
      %s114 = sphi 0, %s114
      %s116 = sphi 0, %s114
      %s117 = sphi 0, %s116
      %s131 = sphi 0, %s117
      %s135 = sphi 0, %s135
      %s137 = sphi 0, %s135
      %s138 = sphi 0, %s137
      %s152 = sphi 0, %s138
      %s158 = sphi 0, %s160
      %s161 = sphi 0, %s158
      %s162 = sphi 0, %s161
      %s178 = sphi 0, %s162
      %s184 = sphi 0, %s186
      %s187 = sphi 0, %s184
      %s188 = sphi 0, %s187
      %s204 = sphi 0, %s188
    $region4: #{tpu_custom_call.1} parent=1 // loop_header_branch
      %20 = sbr.rel (%p18) target = $region8
    $region5: #{tpu_custom_call.1} parent=1 // loop_body
      %s22 = ssub.s32 %s17, 1
      %s23 = ssub.s32 %s17, 2
      %s24 = sadd.s32 %s17, 1
      %s25 = ssub.s32 %s17, %s24
      %p26 = scmp.eq.s32.totalorder %s25, 0
      %s28 = sadd.s32 %s27, 1
      %s29 = scalar_select %p26, %s27, %s28
      %p32 = pneg %p26
      %p33 = scmp.eq.s32.totalorder %s17, 1
      %p34 = por %p32, %p33
      %p35 = scmp.ne.s32.totalorder %s27, %s30
      %p36 = scmp.eq.s32.totalorder %s17, 0
      %p37 = por %p35, %p36
      %p38 = scmp.ne.s32.totalorder %s27, %s30
      %p39 = scmp.eq.s32.totalorder %s22, 1
      %p40 = por %p38, %p39
      %p41 = scmp.ne.s32.totalorder %s30, %s31
      %p42 = scmp.eq.s32.totalorder %s22, 0
      %p43 = por %p41, %p42
      %p44 = scmp.ne.s32.totalorder %s30, %s31
      %p45 = scmp.eq.s32.totalorder %s23, 1
      %p46 = por %p44, %p45
      %p48 = scmp.ne.s32.totalorder %s31, %s47
      %p49 = scmp.eq.s32.totalorder %s23, 0
      %p50 = por %p48, %p49
      %s52 = sadd.s32 %s51, 1
      %p55 = scmp.eq.s32.totalorder %s17, 1
      %p56 = scmp.ne.s32.totalorder %s51, %s53
      %p57 = scmp.eq.s32.totalorder %s17, 0
      %p58 = por %p56, %p57
      %p59 = scmp.ne.s32.totalorder %s51, %s53
      %p60 = scmp.eq.s32.totalorder %s22, 1
      %p61 = por %p59, %p60
      %p62 = scmp.ne.s32.totalorder %s53, %s54
      %p63 = scmp.eq.s32.totalorder %s22, 0
      %p64 = por %p62, %p63
      %p65 = scmp.ne.s32.totalorder %s53, %s54
      %p66 = scmp.eq.s32.totalorder %s23, 1
      %p67 = por %p65, %p66
      %p69 = scmp.ne.s32.totalorder %s54, %s68
      %p70 = scmp.eq.s32.totalorder %s23, 0
      %p71 = por %p69, %p70
      %s73 = sadd.s32 %s72, 1
      %p76 = scmp.eq.s32.totalorder %s17, 1
      %p77 = scmp.ne.s32.totalorder %s72, %s74
      %p78 = scmp.eq.s32.totalorder %s17, 0
      %p79 = por %p77, %p78
      %p80 = scmp.ne.s32.totalorder %s72, %s74
      %p81 = scmp.eq.s32.totalorder %s22, 1
      %p82 = por %p80, %p81
      %p83 = scmp.ne.s32.totalorder %s74, %s75
      %p84 = scmp.eq.s32.totalorder %s22, 0
      %p85 = por %p83, %p84
      %p86 = scmp.ne.s32.totalorder %s74, %s75
      %p87 = scmp.eq.s32.totalorder %s23, 1
      %p88 = por %p86, %p87
      %p90 = scmp.ne.s32.totalorder %s75, %s89
      %p91 = scmp.eq.s32.totalorder %s23, 0
      %p92 = por %p90, %p91
      %s94 = sadd.s32 %s93, 1
      %p97 = scmp.eq.s32.totalorder %s17, 1
      %p98 = scmp.ne.s32.totalorder %s93, %s95
      %p99 = scmp.eq.s32.totalorder %s17, 0
      %p100 = por %p98, %p99
      %p101 = scmp.ne.s32.totalorder %s93, %s95
      %p102 = scmp.eq.s32.totalorder %s22, 1
      %p103 = por %p101, %p102
      %p104 = scmp.ne.s32.totalorder %s95, %s96
      %p105 = scmp.eq.s32.totalorder %s22, 0
      %p106 = por %p104, %p105
      %p107 = scmp.ne.s32.totalorder %s95, %s96
      %p108 = scmp.eq.s32.totalorder %s23, 1
      %p109 = por %p107, %p108
      %p111 = scmp.ne.s32.totalorder %s96, %s110
      %p112 = scmp.eq.s32.totalorder %s23, 0
      %p113 = por %p111, %p112
      %s115 = sadd.s32 %s114, 1
      %p118 = scmp.eq.s32.totalorder %s17, 1
      %p119 = scmp.ne.s32.totalorder %s114, %s116
      %p120 = scmp.eq.s32.totalorder %s17, 0
      %p121 = por %p119, %p120
      %p122 = scmp.ne.s32.totalorder %s114, %s116
      %p123 = scmp.eq.s32.totalorder %s22, 1
      %p124 = por %p122, %p123
      %p125 = scmp.ne.s32.totalorder %s116, %s117
      %p126 = scmp.eq.s32.totalorder %s22, 0
      %p127 = por %p125, %p126
      %p128 = scmp.ne.s32.totalorder %s116, %s117
      %p129 = scmp.eq.s32.totalorder %s23, 1
      %p130 = por %p128, %p129
      %p132 = scmp.ne.s32.totalorder %s117, %s131
      %p133 = scmp.eq.s32.totalorder %s23, 0
      %p134 = por %p132, %p133
      %s136 = sadd.s32 %s135, 1
      %p139 = scmp.eq.s32.totalorder %s17, 1
      %p140 = scmp.ne.s32.totalorder %s135, %s137
      %p141 = scmp.eq.s32.totalorder %s17, 0
      %p142 = por %p140, %p141
      %p143 = scmp.ne.s32.totalorder %s135, %s137
      %p144 = scmp.eq.s32.totalorder %s22, 1
      %p145 = por %p143, %p144
      %p146 = scmp.ne.s32.totalorder %s137, %s138
      %p147 = scmp.eq.s32.totalorder %s22, 0
      %p148 = por %p146, %p147
      %p149 = scmp.ne.s32.totalorder %s137, %s138
      %p150 = scmp.eq.s32.totalorder %s23, 1
      %p151 = por %p149, %p150
      %p153 = scmp.ne.s32.totalorder %s138, %s152
      %p154 = scmp.eq.s32.totalorder %s23, 0
      %p155 = por %p153, %p154
      %s156 = ssub.s32 %s17, %s24
      %p157 = scmp.eq.s32.totalorder %s156, 0
      %s159 = sadd.s32 %s158, 1
      %s160 = scalar_select %p157, %s158, %s159
      %p163 = pneg %p157
      %p164 = scmp.eq.s32.totalorder %s17, 1
      %p165 = por %p163, %p164
      %p166 = scmp.ne.s32.totalorder %s158, %s161
      %p167 = scmp.eq.s32.totalorder %s17, 0
      %p168 = por %p166, %p167
      %p169 = scmp.ne.s32.totalorder %s158, %s161
      %p170 = scmp.eq.s32.totalorder %s22, 1
      %p171 = por %p169, %p170
      %p172 = scmp.ne.s32.totalorder %s161, %s162
      %p173 = scmp.eq.s32.totalorder %s22, 0
      %p174 = por %p172, %p173
      %p175 = scmp.ne.s32.totalorder %s161, %s162
      %p176 = scmp.eq.s32.totalorder %s23, 1
      %p177 = por %p175, %p176
      %p179 = scmp.ne.s32.totalorder %s162, %s178
      %p180 = scmp.eq.s32.totalorder %s23, 0
      %p181 = por %p179, %p180
      %s182 = ssub.s32 %s17, %s24
      %p183 = scmp.eq.s32.totalorder %s182, 0
      %s185 = sadd.s32 %s184, 1
      %s186 = scalar_select %p183, %s184, %s185
      %p189 = pneg %p183
      %p190 = scmp.eq.s32.totalorder %s17, 1
      %p191 = por %p189, %p190
      %p192 = scmp.ne.s32.totalorder %s184, %s187
      %p193 = scmp.eq.s32.totalorder %s17, 0
      %p194 = por %p192, %p193
      %p195 = scmp.ne.s32.totalorder %s184, %s187
      %p196 = scmp.eq.s32.totalorder %s22, 1
      %p197 = por %p195, %p196
      %p198 = scmp.ne.s32.totalorder %s187, %s188
      %p199 = scmp.eq.s32.totalorder %s22, 0
      %p200 = por %p198, %p199
      %p201 = scmp.ne.s32.totalorder %s187, %s188
      %p202 = scmp.eq.s32.totalorder %s23, 1
      %p203 = por %p201, %p202
      %p205 = scmp.ne.s32.totalorder %s188, %s204
      %p206 = scmp.eq.s32.totalorder %s23, 0
      %p207 = por %p205, %p206
      %p208 = scmp.le.s32.totalorder 1, %s17
      %p209 = scmp.lt.s32.totalorder %s17, 3
      %p210 = pnand %p208, %p209
      %p211 = pneg %p210
      // Predicated region
      $region9: #{tpu_custom_call.1} parent=5 // pred_check
        _
      $region10: #{tpu_custom_call.1} parent=5 // pred_check_branch
        %213 = sbr.rel (%p210) target = $region12
      $region11: #{tpu_custom_call.1} parent=5 // pred_region
        %s214 = ssub.s32 %s17, 1
        // Predicated region
        $region13: #{tpu_custom_call.1} parent=11 // pred_check
          %p215 = pneg %p64
        $region14: #{tpu_custom_call.1} parent=11 // pred_check_branch
          %217 = sbr.rel (%p215) target = $region16
        $region15: #{tpu_custom_call.1} parent=11 // pred_region
          _
        $region16: #{tpu_custom_call.1} parent=11 // pred_fallthru
          _
        // Predicated region
        $region17: #{tpu_custom_call.1} parent=11 // pred_check
          %p218 = pneg %p85
        $region18: #{tpu_custom_call.1} parent=11 // pred_check_branch
          %220 = sbr.rel (%p218) target = $region20
        $region19: #{tpu_custom_call.1} parent=11 // pred_region
          _
        $region20: #{tpu_custom_call.1} parent=11 // pred_fallthru
          _
        // Predicated region
        $region21: #{tpu_custom_call.1} parent=11 // pred_check
          %p221 = pneg %p106
        $region22: #{tpu_custom_call.1} parent=11 // pred_check_branch
          %223 = sbr.rel (%p221) target = $region24
        $region23: #{tpu_custom_call.1} parent=11 // pred_region
          _
        $region24: #{tpu_custom_call.1} parent=11 // pred_fallthru
          _
        // Predicated region
        $region25: #{tpu_custom_call.1} parent=11 // pred_check
          %p224 = pneg %p127
        $region26: #{tpu_custom_call.1} parent=11 // pred_check_branch
          %226 = sbr.rel (%p224) target = $region28
        $region27: #{tpu_custom_call.1} parent=11 // pred_region
          _
        $region28: #{tpu_custom_call.1} parent=11 // pred_fallthru
          _
        // Predicated region
        $region29: #{tpu_custom_call.1} parent=11 // pred_check
          %p227 = pneg %p148
        $region30: #{tpu_custom_call.1} parent=11 // pred_check_branch
          %229 = sbr.rel (%p227) target = $region32
        $region31: #{tpu_custom_call.1} parent=11 // pred_region
          _
        $region32: #{tpu_custom_call.1} parent=11 // pred_fallthru
          _
      $region12: #{tpu_custom_call.1} parent=5 // pred_fallthru
        _
      %p230 = scmp.lt.s32.totalorder %s17, 2
      // Predicated region
      $region33: #{tpu_custom_call.1} parent=5 // pred_check
        %p231 = pneg %p230
      $region34: #{tpu_custom_call.1} parent=5 // pred_check_branch
        %233 = sbr.rel (%p231) target = $region36
      $region35: #{tpu_custom_call.1} parent=5 // pred_region
        // Predicated region
        $region37: #{tpu_custom_call.1} parent=35 // pred_check
          %p234 = pneg %p37
        $region38: #{tpu_custom_call.1} parent=35 // pred_check_branch
          %236 = sbr.rel (%p234) target = $region40
        $region39: #{tpu_custom_call.1} parent=35 // pred_region
          %s237 = smul.u32 16, %s17
          %p238 = scmp.lt.s32.totalorder %s237, 31
          %s239 = scalar_select %p238, %s237, 31
          %s240 = smul.addr %s239, 8
          %s241 = scalar_lea.vmem %s0, %s240
          %s242 = smul.u32 16, %s17
        $region40: #{tpu_custom_call.1} parent=35 // pred_fallthru
          _
      $region36: #{tpu_custom_call.1} parent=5 // pred_fallthru
        _
      %p243 = scmp.le.s32.totalorder 1, %s17
      %p244 = scmp.lt.s32.totalorder %s17, 3
      %p245 = pnand %p243, %p244
      %p246 = pneg %p245
      // Predicated region
      $region41: #{tpu_custom_call.1} parent=5 // pred_check
        _
      $region42: #{tpu_custom_call.1} parent=5 // pred_check_branch
        %248 = sbr.rel (%p245) target = $region44
      $region43: #{tpu_custom_call.1} parent=5 // pred_region
        %s249 = ssub.s32 %s17, 1
        %s250 = smul.u32 16, %s22
        %p251 = scmp.lt.s32.totalorder %s250, 31
        %s252 = scalar_select %p251, %s250, 31
        %s253 = smul.addr %s252, 8
        %s254 = scalar_lea.vmem %s0, %s253
        %p255 = pneg %p43
        %p256 = pneg %p40
        %p257 = pneg %p64
        %p258 = pneg %p61
        %p259 = pneg %p85
        %p260 = pneg %p82
        %p261 = pneg %p106
        %p262 = pneg %p103
        %p263 = pneg %p127
        %p264 = pneg %p124
        %p265 = pneg %p148
        %p266 = pneg %p145
        %p267 = pneg %p174
        %p268 = pneg %p171
        %s269 = smul.u32 16, %s22
        %p270 = scmp.lt.s32.totalorder %s269, 31
        %s271 = scalar_select %p270, %s269, 31
        %s272 = smul.addr %s271, 8
        %s273 = scalar_lea.vmem %s6, %s272
        %p274 = pneg %p200
        %p275 = pneg %p197
        %s276 = sand.u32 %s187, 1
        %s277 = scalar_lea.sflag [#allocation3], %s276
        %s278 = sand.u32 %s187, 1
        %s279 = smul.addr %s278, 128
        %s280 = scalar_lea.vmem [#allocation2], %s279
        %s281 = smul.u32 16, %s22
        %p282 = scmp.lt.s32.totalorder %s281, 31
        %s283 = scalar_select %p282, %s281, 31
        %s284 = smul.addr %s283, 8
        %s285 = scalar_lea.vmem %s0, %s284
        %s286 = smul.u32 16, %s22
        %s287 = smul.u32 16, %s22
        %p288 = scmp.lt.s32.totalorder %s287, 31
        %s289 = scalar_select %p288, %s287, 31
        %s290 = smul.addr %s289, 8
        %s291 = scalar_lea.vmem %s6, %s290
        %s292 = smul.u32 16, %s22
        %s293 = smul.u32 16, %s22
        %v294 = vld [vmem:[%s285] sm:$0xff]
        %v295 = vld [vmem:[%s285 + $0x8] sm:$0xff]
        %v296 = vld [vmem:[%s285 + $0x10] sm:$0xff]
        %v297 = vld [vmem:[%s285 + $0x18] sm:$0xff]
        %v298 = vld [vmem:[%s285 + $0x20] sm:$0xff]
        %v299 = vld [vmem:[%s285 + $0x28] sm:$0xff]
        %v300 = vld [vmem:[%s285 + $0x30] sm:$0xff]
        %v301 = vld [vmem:[%s285 + $0x38] sm:$0xff]
        %v302 = vld [vmem:[%s285 + $0x40] sm:$0xff]
        %v303 = vld [vmem:[%s285 + $0x48] sm:$0xff]
        %v304 = vld [vmem:[%s285 + $0x50] sm:$0xff]
        %v305 = vld [vmem:[%s285 + $0x58] sm:$0xff]
        %v306 = vld [vmem:[%s285 + $0x60] sm:$0xff]
        %v307 = vld [vmem:[%s285 + $0x68] sm:$0xff]
        %v308 = vld [vmem:[%s285 + $0x70] sm:$0xff]
        %v309 = vld [vmem:[%s285 + $0x78] sm:$0xff]
        %v310 = vld [vmem:[%s1] sm:$0xff]
        %v311 = vld [vmem:[%s1 + $0x8] sm:$0xff]
        %v312 = vld [vmem:[%s1 + $0x10] sm:$0xff]
        %v313 = vld [vmem:[%s1 + $0x18] sm:$0xff]
        %v314 = vld [vmem:[%s2] sm:$0x1]
        %v316 = vlaneseq
        %v317 = vshrl.u32 %v316, 7
        %v318 = vsub.s32 0, %v317
        %v319 = vrot.slane %v314, %v318
        %vm321 = vcmask 261120
        %v323 = vsel %vm321, %v294, 0
        %v326 = vsel %vm321, %v295, 0
        %v329 = vsel %vm321, %v296, 0
        %v332 = vsel %vm321, %v297, 0
        %v335 = vsel %vm321, %v298, 0
        %v338 = vsel %vm321, %v299, 0
        %v341 = vsel %vm321, %v300, 0
        %v344 = vsel %vm321, %v301, 0
        %v347 = vsel %vm321, %v302, 0
        %v350 = vsel %vm321, %v303, 0
        %v353 = vsel %vm321, %v304, 0
        %v356 = vsel %vm321, %v305, 0
        %v359 = vsel %vm321, %v306, 0
        %v362 = vsel %vm321, %v307, 0
        %v365 = vsel %vm321, %v308, 0
        %v368 = vsel %vm321, %v309, 0
        %370 = vmatprep.subr.mxu0 0.0
        %371 = vmatpush1.msra.mxu0 %v310
        %372 = vmatprep.subr.mxu0 0.0
        %373 = vmatpush1.msra.mxu0 %v311
        %374 = vmatprep.subr.mxu0 0.0
        %375 = vmatpush1.msra.mxu0 %v312
        %376 = vmatprep.subr.mxu0 0.0
        %377 = vmatpush1.msra.mxu0 %v313
        %378 = vmatprep.subr.mxu0 0.0
        %379 = vmatpush1.msra.mxu0 0.0
        %380 = vmatprep.subr.mxu0 0.0
        %381 = vmatpush1.msra.mxu0 0.0
        %382 = vmatprep.subr.mxu0 0.0
        %383 = vmatpush1.msra.mxu0 0.0
        %384 = vmatprep.subr.mxu0 0.0
        %385 = vmatpush1.msra.mxu0 0.0
        %386 = vmatprep.subr.mxu0 0.0
        %387 = vmatpush1.msra.mxu0 0.0
        %388 = vmatprep.subr.mxu0 0.0
        %389 = vmatpush1.msra.mxu0 0.0
        %390 = vmatprep.subr.mxu0 0.0
        %391 = vmatpush1.msra.mxu0 0.0
        %392 = vmatprep.subr.mxu0 0.0
        %393 = vmatpush1.msra.mxu0 0.0
        %394 = vmatprep.subr.mxu0 0.0
        %395 = vmatpush1.msra.mxu0 0.0
        %396 = vmatprep.subr.mxu0 0.0
        %397 = vmatpush1.msra.mxu0 0.0
        %398 = vmatprep.subr.mxu0 0.0
        %399 = vmatpush1.msra.mxu0 0.0
        %400 = vmatprep.subr.mxu0 0.0
        %401 = vmatpush1.msra.mxu0 0.0
        %402 = vmatprep.subr.mxu0 0.0
        %403 = vmatpush1.msra.mxu0 0.0
        %404 = vmatprep.subr.mxu0 0.0
        %405 = vmatpush1.msra.mxu0 0.0
        %406 = vmatprep.subr.mxu0 0.0
        %407 = vmatpush1.msra.mxu0 0.0
        %408 = vmatprep.subr.mxu0 0.0
        %409 = vmatpush1.msra.mxu0 0.0
        %410 = vmatprep.subr.mxu0 0.0
        %411 = vmatpush1.msra.mxu0 0.0
        %412 = vmatprep.subr.mxu0 0.0
        %413 = vmatpush1.msra.mxu0 0.0
        %414 = vmatprep.subr.mxu0 0.0
        %415 = vmatpush1.msra.mxu0 0.0
        %416 = vmatprep.subr.mxu0 0.0
        %417 = vmatpush1.msra.mxu0 0.0
        %418 = vmatprep.subr.mxu0 0.0
        %419 = vmatpush1.msra.mxu0 0.0
        %420 = vmatprep.subr.mxu0 0.0
        %421 = vmatpush1.msra.mxu0 0.0
        %422 = vmatprep.subr.mxu0 0.0
        %423 = vmatpush1.msra.mxu0 0.0
        %424 = vmatprep.subr.mxu0 0.0
        %425 = vmatpush1.msra.mxu0 0.0
        %426 = vmatprep.subr.mxu0 0.0
        %427 = vmatpush1.msra.mxu0 0.0
        %428 = vmatprep.subr.mxu0 0.0
        %429 = vmatpush1.msra.mxu0 0.0
        %430 = vmatprep.subr.mxu0 0.0
        %431 = vmatpush1.msra.mxu0 0.0
        %432 = vmatprep.subr.mxu0 0.0
        %433 = vmatpush1.msra.mxu0 0.0
        %434 = vmatprep.mubr.f32.mxu0 0.0
        %435 = vmatmul.mubr.f32.gmra.mrb[0].mxu0 %v323
        %v436 = vpop.f32.mrb[0].mxu0
        %v437 = vadd.f32 %v319, %v436
        %v438 = vpop.f32.mrb[0].mxu0
        %439 = vmatprep.mubr.f32.mxu0 0.0
        %440 = vmatmul.mubr.f32.gmra.mrb[0].mxu0 %v326
        %v441 = vpop.f32.mrb[0].mxu0
        %v442 = vadd.f32 %v319, %v441
        %v443 = vpop.f32.mrb[0].mxu0
        %444 = vmatprep.mubr.f32.mxu0 0.0
        %445 = vmatmul.mubr.f32.gmra.mrb[0].mxu0 %v329
        %v446 = vpop.f32.mrb[0].mxu0
        %v447 = vadd.f32 %v319, %v446
        %v448 = vpop.f32.mrb[0].mxu0
        %449 = vmatprep.mubr.f32.mxu0 0.0
        %450 = vmatmul.mubr.f32.gmra.mrb[0].mxu0 %v332
        %v451 = vpop.f32.mrb[0].mxu0
        %v452 = vadd.f32 %v319, %v451
        %v453 = vpop.f32.mrb[0].mxu0
        %454 = vmatprep.mubr.f32.mxu0 0.0
        %455 = vmatmul.mubr.f32.gmra.mrb[0].mxu0 %v335
        %v456 = vpop.f32.mrb[0].mxu0
        %v457 = vadd.f32 %v319, %v456
        %v458 = vpop.f32.mrb[0].mxu0
        %459 = vmatprep.mubr.f32.mxu0 0.0
        %460 = vmatmul.mubr.f32.gmra.mrb[0].mxu0 %v338
        %v461 = vpop.f32.mrb[0].mxu0
        %v462 = vadd.f32 %v319, %v461
        %v463 = vpop.f32.mrb[0].mxu0
        %464 = vmatprep.mubr.f32.mxu0 0.0
        %465 = vmatmul.mubr.f32.gmra.mrb[0].mxu0 %v341
        %v466 = vpop.f32.mrb[0].mxu0
        %v467 = vadd.f32 %v319, %v466
        %v468 = vpop.f32.mrb[0].mxu0
        %469 = vmatprep.mubr.f32.mxu0 0.0
        %470 = vmatmul.mubr.f32.gmra.mrb[0].mxu0 %v344
        %v471 = vpop.f32.mrb[0].mxu0
        %v472 = vadd.f32 %v319, %v471
        %v473 = vpop.f32.mrb[0].mxu0
        %474 = vmatprep.mubr.f32.mxu0 0.0
        %475 = vmatmul.mubr.f32.gmra.mrb[0].mxu0 %v347
        %v476 = vpop.f32.mrb[0].mxu0
        %v477 = vadd.f32 %v319, %v476
        %v478 = vpop.f32.mrb[0].mxu0
        %479 = vmatprep.mubr.f32.mxu0 0.0
        %480 = vmatmul.mubr.f32.gmra.mrb[0].mxu0 %v350
        %v481 = vpop.f32.mrb[0].mxu0
        %v482 = vadd.f32 %v319, %v481
        %v483 = vpop.f32.mrb[0].mxu0
        %484 = vmatprep.mubr.f32.mxu0 0.0
        %485 = vmatmul.mubr.f32.gmra.mrb[0].mxu0 %v353
        %v486 = vpop.f32.mrb[0].mxu0
        %v487 = vadd.f32 %v319, %v486
        %v488 = vpop.f32.mrb[0].mxu0
        %489 = vmatprep.mubr.f32.mxu0 0.0
        %490 = vmatmul.mubr.f32.gmra.mrb[0].mxu0 %v356
        %v491 = vpop.f32.mrb[0].mxu0
        %v492 = vadd.f32 %v319, %v491
        %v493 = vpop.f32.mrb[0].mxu0
        %494 = vmatprep.mubr.f32.mxu0 0.0
        %495 = vmatmul.mubr.f32.gmra.mrb[0].mxu0 %v359
        %v496 = vpop.f32.mrb[0].mxu0
        %v497 = vadd.f32 %v319, %v496
        %v498 = vpop.f32.mrb[0].mxu0
        %499 = vmatprep.mubr.f32.mxu0 0.0
        %500 = vmatmul.mubr.f32.gmra.mrb[0].mxu0 %v362
        %v501 = vpop.f32.mrb[0].mxu0
        %v502 = vadd.f32 %v319, %v501
        %v503 = vpop.f32.mrb[0].mxu0
        %504 = vmatprep.mubr.f32.mxu0 0.0
        %505 = vmatmul.mubr.f32.gmra.mrb[0].mxu0 %v365
        %v506 = vpop.f32.mrb[0].mxu0
        %v507 = vadd.f32 %v319, %v506
        %v508 = vpop.f32.mrb[0].mxu0
        %509 = vmatprep.mubr.f32.mxu0 0.0
        %510 = vmatmul.mubr.f32.gmra.mrb[0].mxu0 %v368
        %v511 = vpop.f32.mrb[0].mxu0
        %v512 = vadd.f32 %v319, %v511
        %v513 = vpop.f32.mrb[0].mxu0
        %514 = vdwg.mxu0
        %v515 = vld [vmem:[%s5] sm:$0xff]
        %v516 = vld [vmem:[%s5 + $0x8] sm:$0xff]
        %v517 = vld [vmem:[%s5 + $0x10] sm:$0xff]
        %v518 = vld [vmem:[%s5 + $0x18] sm:$0xff]
        %v519 = vld [vmem:[%s5 + $0x20] sm:$0xff]
        %v520 = vld [vmem:[%s5 + $0x28] sm:$0xff]
        %v521 = vld [vmem:[%s5 + $0x30] sm:$0xff]
        %v522 = vld [vmem:[%s5 + $0x38] sm:$0xff]
        %v523 = vld [vmem:[%s5 + $0x40] sm:$0xff]
        %v524 = vld [vmem:[%s5 + $0x48] sm:$0xff]
        %v525 = vld [vmem:[%s5 + $0x50] sm:$0xff]
        %v526 = vld [vmem:[%s5 + $0x58] sm:$0xff]
        %v527 = vld [vmem:[%s5 + $0x60] sm:$0xff]
        %v528 = vld [vmem:[%s5 + $0x68] sm:$0xff]
        %v529 = vld [vmem:[%s5 + $0x70] sm:$0xff]
        %v530 = vld [vmem:[%s5 + $0x78] sm:$0xff]
        %547 = vrot.lane.b32.xlu0 %v437, 96
        %v548 = vpop.permute.xlu0 %547
        %549 = vrot.lane.b32.xlu0 %v442, 96
        %v550 = vpop.permute.xlu0 %549
        %551 = vrot.lane.b32.xlu0 %v447, 96
        %v552 = vpop.permute.xlu0 %551
        %553 = vrot.lane.b32.xlu0 %v452, 96
        %v554 = vpop.permute.xlu0 %553
        %555 = vrot.lane.b32.xlu0 %v457, 96
        %v556 = vpop.permute.xlu0 %555
        %557 = vrot.lane.b32.xlu0 %v462, 96
        %v558 = vpop.permute.xlu0 %557
        %559 = vrot.lane.b32.xlu0 %v467, 96
        %v560 = vpop.permute.xlu0 %559
        %561 = vrot.lane.b32.xlu0 %v472, 96
        %v562 = vpop.permute.xlu0 %561
        %563 = vrot.lane.b32.xlu0 %v477, 96
        %v564 = vpop.permute.xlu0 %563
        %565 = vrot.lane.b32.xlu0 %v482, 96
        %v566 = vpop.permute.xlu0 %565
        %567 = vrot.lane.b32.xlu0 %v487, 96
        %v568 = vpop.permute.xlu0 %567
        %569 = vrot.lane.b32.xlu0 %v492, 96
        %v570 = vpop.permute.xlu0 %569
        %571 = vrot.lane.b32.xlu0 %v497, 96
        %v572 = vpop.permute.xlu0 %571
        %573 = vrot.lane.b32.xlu0 %v502, 96
        %v574 = vpop.permute.xlu0 %573
        %575 = vrot.lane.b32.xlu0 %v507, 96
        %v576 = vpop.permute.xlu0 %575
        %577 = vrot.lane.b32.xlu0 %v512, 96
        %v578 = vpop.permute.xlu0 %577
        %v579 = vsel %vm321, %v437, 0
        %v581 = vsel %vm321, %v442, 0
        %v583 = vsel %vm321, %v447, 0
        %v585 = vsel %vm321, %v452, 0
        %v587 = vsel %vm321, %v457, 0
        %v589 = vsel %vm321, %v462, 0
        %v591 = vsel %vm321, %v467, 0
        %v593 = vsel %vm321, %v472, 0
        %v595 = vsel %vm321, %v477, 0
        %v597 = vsel %vm321, %v482, 0
        %v599 = vsel %vm321, %v487, 0
        %v601 = vsel %vm321, %v492, 0
        %v603 = vsel %vm321, %v497, 0
        %v605 = vsel %vm321, %v502, 0
        %v607 = vsel %vm321, %v507, 0
        %v609 = vsel %vm321, %v512, 0
        %v611 = vsel %vm321, %v548, 0
        %v613 = vsel %vm321, %v550, 0
        %v615 = vsel %vm321, %v552, 0
        %v617 = vsel %vm321, %v554, 0
        %v619 = vsel %vm321, %v556, 0
        %v621 = vsel %vm321, %v558, 0
        %v623 = vsel %vm321, %v560, 0
        %v625 = vsel %vm321, %v562, 0
        %v627 = vsel %vm321, %v564, 0
        %v629 = vsel %vm321, %v566, 0
        %v631 = vsel %vm321, %v568, 0
        %v633 = vsel %vm321, %v570, 0
        %v635 = vsel %vm321, %v572, 0
        %v637 = vsel %vm321, %v574, 0
        %v639 = vsel %vm321, %v576, 0
        %v641 = vsel %vm321, %v578, 0
        %643 = vmatprep.subr.mxu0 0.0
        %644 = vmatpush1.xpose.msra.mxu0 %v611
        %645 = vmatprep.subr.mxu0 0.0
        %646 = vmatpush1.xpose.msra.mxu0 %v613
        %647 = vmatprep.subr.mxu0 0.0
        %648 = vmatpush1.xpose.msra.mxu0 %v615
        %649 = vmatprep.subr.mxu0 0.0
        %650 = vmatpush1.xpose.msra.mxu0 %v617
        %651 = vmatprep.subr.mxu0 0.0
        %652 = vmatpush1.xpose.msra.mxu0 %v619
        %653 = vmatprep.subr.mxu0 0.0
        %654 = vmatpush1.xpose.msra.mxu0 %v621
        %655 = vmatprep.subr.mxu0 0.0
        %656 = vmatpush1.xpose.msra.mxu0 %v623
        %657 = vmatprep.subr.mxu0 0.0
        %658 = vmatpush1.xpose.msra.mxu0 %v625
        %659 = vmatprep.subr.mxu0 0.0
        %660 = vmatpush1.xpose.msra.mxu0 %v627
        %661 = vmatprep.subr.mxu0 0.0
        %662 = vmatpush1.xpose.msra.mxu0 %v629
        %663 = vmatprep.subr.mxu0 0.0
        %664 = vmatpush1.xpose.msra.mxu0 %v631
        %665 = vmatprep.subr.mxu0 0.0
        %666 = vmatpush1.xpose.msra.mxu0 %v633
        %667 = vmatprep.subr.mxu0 0.0
        %668 = vmatpush1.xpose.msra.mxu0 %v635
        %669 = vmatprep.subr.mxu0 0.0
        %670 = vmatpush1.xpose.msra.mxu0 %v637
        %671 = vmatprep.subr.mxu0 0.0
        %672 = vmatpush1.xpose.msra.mxu0 %v639
        %673 = vmatprep.subr.mxu0 0.0
        %674 = vmatpush1.xpose.msra.mxu0 %v641
        %675 = vmatprep.subr.mxu0 0.0
        %676 = vmatpush1.xpose.msra.mxu0 0.0
        %677 = vmatprep.subr.mxu0 0.0
        %678 = vmatpush1.xpose.msra.mxu0 0.0
        %679 = vmatprep.subr.mxu0 0.0
        %680 = vmatpush1.xpose.msra.mxu0 0.0
        %681 = vmatprep.subr.mxu0 0.0
        %682 = vmatpush1.xpose.msra.mxu0 0.0
        %683 = vmatprep.subr.mxu0 0.0
        %684 = vmatpush1.xpose.msra.mxu0 0.0
        %685 = vmatprep.subr.mxu0 0.0
        %686 = vmatpush1.xpose.msra.mxu0 0.0
        %687 = vmatprep.subr.mxu0 0.0
        %688 = vmatpush1.xpose.msra.mxu0 0.0
        %689 = vmatprep.subr.mxu0 0.0
        %690 = vmatpush1.xpose.msra.mxu0 0.0
        %691 = vmatprep.subr.mxu0 0.0
        %692 = vmatpush1.xpose.msra.mxu0 0.0
        %693 = vmatprep.subr.mxu0 0.0
        %694 = vmatpush1.xpose.msra.mxu0 0.0
        %695 = vmatprep.subr.mxu0 0.0
        %696 = vmatpush1.xpose.msra.mxu0 0.0
        %697 = vmatprep.subr.mxu0 0.0
        %698 = vmatpush1.xpose.msra.mxu0 0.0
        %699 = vmatprep.subr.mxu0 0.0
        %700 = vmatpush1.xpose.msra.mxu0 0.0
        %701 = vmatprep.subr.mxu0 0.0
        %702 = vmatpush1.xpose.msra.mxu0 0.0
        %703 = vmatprep.subr.mxu0 0.0
        %704 = vmatpush1.xpose.msra.mxu0 0.0
        %705 = vmatprep.subr.mxu0 0.0
        %706 = vmatpush1.xpose.msra.mxu0 0.0
        %707 = vmatprep.mubr.f32.mxu0 0.0
        %708 = vmatmul.mubr.f32.gmra.mrb[0].mxu0 %v579
        %v709 = vpop.f32.mrb[0].mxu0
        %v710 = vadd.f32 %v515, %v709
        %v711 = vpop.f32.mrb[0].mxu0
        %712 = vmatprep.mubr.f32.mxu0 0.0
        %713 = vmatmul.mubr.f32.gmra.mrb[0].mxu0 %v581
        %v714 = vpop.f32.mrb[0].mxu0
        %v715 = vadd.f32 %v516, %v714
        %v716 = vpop.f32.mrb[0].mxu0
        %717 = vmatprep.mubr.f32.mxu0 0.0
        %718 = vmatmul.mubr.f32.gmra.mrb[0].mxu0 %v583
        %v719 = vpop.f32.mrb[0].mxu0
        %v720 = vadd.f32 %v517, %v719
        %v721 = vpop.f32.mrb[0].mxu0
        %722 = vmatprep.mubr.f32.mxu0 0.0
        %723 = vmatmul.mubr.f32.gmra.mrb[0].mxu0 %v585
        %v724 = vpop.f32.mrb[0].mxu0
        %v725 = vadd.f32 %v518, %v724
        %v726 = vpop.f32.mrb[0].mxu0
        %727 = vmatprep.mubr.f32.mxu0 0.0
        %728 = vmatmul.mubr.f32.gmra.mrb[0].mxu0 %v587
        %v729 = vpop.f32.mrb[0].mxu0
        %v730 = vadd.f32 %v519, %v729
        %v731 = vpop.f32.mrb[0].mxu0
        %732 = vmatprep.mubr.f32.mxu0 0.0
        %733 = vmatmul.mubr.f32.gmra.mrb[0].mxu0 %v589
        %v734 = vpop.f32.mrb[0].mxu0
        %v735 = vadd.f32 %v520, %v734
        %v736 = vpop.f32.mrb[0].mxu0
        %737 = vmatprep.mubr.f32.mxu0 0.0
        %738 = vmatmul.mubr.f32.gmra.mrb[0].mxu0 %v591
        %v739 = vpop.f32.mrb[0].mxu0
        %v740 = vadd.f32 %v521, %v739
        %v741 = vpop.f32.mrb[0].mxu0
        %742 = vmatprep.mubr.f32.mxu0 0.0
        %743 = vmatmul.mubr.f32.gmra.mrb[0].mxu0 %v593
        %v744 = vpop.f32.mrb[0].mxu0
        %v745 = vadd.f32 %v522, %v744
        %v746 = vpop.f32.mrb[0].mxu0
        %747 = vmatprep.mubr.f32.mxu0 0.0
        %748 = vmatmul.mubr.f32.gmra.mrb[0].mxu0 %v595
        %v749 = vpop.f32.mrb[0].mxu0
        %v750 = vadd.f32 %v523, %v749
        %v751 = vpop.f32.mrb[0].mxu0
        %752 = vmatprep.mubr.f32.mxu0 0.0
        %753 = vmatmul.mubr.f32.gmra.mrb[0].mxu0 %v597
        %v754 = vpop.f32.mrb[0].mxu0
        %v755 = vadd.f32 %v524, %v754
        %v756 = vpop.f32.mrb[0].mxu0
        %757 = vmatprep.mubr.f32.mxu0 0.0
        %758 = vmatmul.mubr.f32.gmra.mrb[0].mxu0 %v599
        %v759 = vpop.f32.mrb[0].mxu0
        %v760 = vadd.f32 %v525, %v759
        %v761 = vpop.f32.mrb[0].mxu0
        %762 = vmatprep.mubr.f32.mxu0 0.0
        %763 = vmatmul.mubr.f32.gmra.mrb[0].mxu0 %v601
        %v764 = vpop.f32.mrb[0].mxu0
        %v765 = vadd.f32 %v526, %v764
        %v766 = vpop.f32.mrb[0].mxu0
        %767 = vmatprep.mubr.f32.mxu0 0.0
        %768 = vmatmul.mubr.f32.gmra.mrb[0].mxu0 %v603
        %v769 = vpop.f32.mrb[0].mxu0
        %v770 = vadd.f32 %v527, %v769
        %v771 = vpop.f32.mrb[0].mxu0
        %772 = vmatprep.mubr.f32.mxu0 0.0
        %773 = vmatmul.mubr.f32.gmra.mrb[0].mxu0 %v605
        %v774 = vpop.f32.mrb[0].mxu0
        %v775 = vadd.f32 %v528, %v774
        %v776 = vpop.f32.mrb[0].mxu0
        %777 = vmatprep.mubr.f32.mxu0 0.0
        %778 = vmatmul.mubr.f32.gmra.mrb[0].mxu0 %v607
        %v779 = vpop.f32.mrb[0].mxu0
        %v780 = vadd.f32 %v529, %v779
        %v781 = vpop.f32.mrb[0].mxu0
        %782 = vmatprep.mubr.f32.mxu0 0.0
        %783 = vmatmul.mubr.f32.gmra.mrb[0].mxu0 %v609
        %v784 = vpop.f32.mrb[0].mxu0
        %v785 = vadd.f32 %v530, %v784
        %v786 = vpop.f32.mrb[0].mxu0
        %787 = vdwg.mxu0
        %788 = vmax.xlane.f32.xlu0 %v710
        %v789 = vpop.xlane.xlu0 %788
        %790 = vmax.xlane.f32.xlu0 %v715
        %v791 = vpop.xlane.xlu0 %790
        %792 = vmax.xlane.f32.xlu0 %v720
        %v793 = vpop.xlane.xlu0 %792
        %794 = vmax.xlane.f32.xlu0 %v725
        %v795 = vpop.xlane.xlu0 %794
        %796 = vmax.xlane.f32.xlu0 %v730
        %v797 = vpop.xlane.xlu0 %796
        %798 = vmax.xlane.f32.xlu0 %v735
        %v799 = vpop.xlane.xlu0 %798
        %800 = vmax.xlane.f32.xlu0 %v740
        %v801 = vpop.xlane.xlu0 %800
        %802 = vmax.xlane.f32.xlu0 %v745
        %v803 = vpop.xlane.xlu0 %802
        %804 = vmax.xlane.f32.xlu0 %v750
        %v805 = vpop.xlane.xlu0 %804
        %806 = vmax.xlane.f32.xlu0 %v755
        %v807 = vpop.xlane.xlu0 %806
        %808 = vmax.xlane.f32.xlu0 %v760
        %v809 = vpop.xlane.xlu0 %808
        %810 = vmax.xlane.f32.xlu0 %v765
        %v811 = vpop.xlane.xlu0 %810
        %812 = vmax.xlane.f32.xlu0 %v770
        %v813 = vpop.xlane.xlu0 %812
        %814 = vmax.xlane.f32.xlu0 %v775
        %v815 = vpop.xlane.xlu0 %814
        %816 = vmax.xlane.f32.xlu0 %v780
        %v817 = vpop.xlane.xlu0 %816
        %818 = vmax.xlane.f32.xlu0 %v785
        %v819 = vpop.xlane.xlu0 %818
        %v820 = vsub.f32 %v710, %v789
        %v821 = vsub.f32 %v715, %v791
        %v822 = vsub.f32 %v720, %v793
        %v823 = vsub.f32 %v725, %v795
        %v824 = vsub.f32 %v730, %v797
        %v825 = vsub.f32 %v735, %v799
        %v826 = vsub.f32 %v740, %v801
        %v827 = vsub.f32 %v745, %v803
        %v828 = vsub.f32 %v750, %v805
        %v829 = vsub.f32 %v755, %v807
        %v830 = vsub.f32 %v760, %v809
        %v831 = vsub.f32 %v765, %v811
        %v832 = vsub.f32 %v770, %v813
        %v833 = vsub.f32 %v775, %v815
        %v834 = vsub.f32 %v780, %v817
        %v835 = vsub.f32 %v785, %v819
        %v836 = vmul.f32 %v820, 1.442695
        %v837 = vpow.pop %v836
        %v838 = vmul.f32 %v821, 1.442695
        %v839 = vpow.pop %v838
        %v840 = vmul.f32 %v822, 1.442695
        %v841 = vpow.pop %v840
        %v842 = vmul.f32 %v823, 1.442695
        %v843 = vpow.pop %v842
        %v844 = vmul.f32 %v824, 1.442695
        %v845 = vpow.pop %v844
        %v846 = vmul.f32 %v825, 1.442695
        %v847 = vpow.pop %v846
        %v848 = vmul.f32 %v826, 1.442695
        %v849 = vpow.pop %v848
        %v850 = vmul.f32 %v827, 1.442695
        %v851 = vpow.pop %v850
        %v852 = vmul.f32 %v828, 1.442695
        %v853 = vpow.pop %v852
        %v854 = vmul.f32 %v829, 1.442695
        %v855 = vpow.pop %v854
        %v856 = vmul.f32 %v830, 1.442695
        %v857 = vpow.pop %v856
        %v858 = vmul.f32 %v831, 1.442695
        %v859 = vpow.pop %v858
        %v860 = vmul.f32 %v832, 1.442695
        %v861 = vpow.pop %v860
        %v862 = vmul.f32 %v833, 1.442695
        %v863 = vpow.pop %v862
        %v864 = vmul.f32 %v834, 1.442695
        %v865 = vpow.pop %v864
        %v866 = vmul.f32 %v835, 1.442695
        %v867 = vpow.pop %v866
        %868 = vadd.xlane.f32.xlu0 %v837
        %v869 = vpop.xlane.xlu0 %868
        %870 = vadd.xlane.f32.xlu0 %v839
        %v871 = vpop.xlane.xlu0 %870
        %872 = vadd.xlane.f32.xlu0 %v841
        %v873 = vpop.xlane.xlu0 %872
        %874 = vadd.xlane.f32.xlu0 %v843
        %v875 = vpop.xlane.xlu0 %874
        %876 = vadd.xlane.f32.xlu0 %v845
        %v877 = vpop.xlane.xlu0 %876
        %878 = vadd.xlane.f32.xlu0 %v847
        %v879 = vpop.xlane.xlu0 %878
        %880 = vadd.xlane.f32.xlu0 %v849
        %v881 = vpop.xlane.xlu0 %880
        %882 = vadd.xlane.f32.xlu0 %v851
        %v883 = vpop.xlane.xlu0 %882
        %884 = vadd.xlane.f32.xlu0 %v853
        %v885 = vpop.xlane.xlu0 %884
        %886 = vadd.xlane.f32.xlu0 %v855
        %v887 = vpop.xlane.xlu0 %886
        %888 = vadd.xlane.f32.xlu0 %v857
        %v889 = vpop.xlane.xlu0 %888
        %890 = vadd.xlane.f32.xlu0 %v859
        %v891 = vpop.xlane.xlu0 %890
        %892 = vadd.xlane.f32.xlu0 %v861
        %v893 = vpop.xlane.xlu0 %892
        %894 = vadd.xlane.f32.xlu0 %v863
        %v895 = vpop.xlane.xlu0 %894
        %896 = vadd.xlane.f32.xlu0 %v865
        %v897 = vpop.xlane.xlu0 %896
        %898 = vadd.xlane.f32.xlu0 %v867
        %v899 = vpop.xlane.xlu0 %898
        %v900 = vrcp.pop %v869
        %v901 = vrcp.pop %v871
        %v902 = vrcp.pop %v873
        %v903 = vrcp.pop %v875
        %v904 = vrcp.pop %v877
        %v905 = vrcp.pop %v879
        %v906 = vrcp.pop %v881
        %v907 = vrcp.pop %v883
        %v908 = vrcp.pop %v885
        %v909 = vrcp.pop %v887
        %v910 = vrcp.pop %v889
        %v911 = vrcp.pop %v891
        %v912 = vrcp.pop %v893
        %v913 = vrcp.pop %v895
        %v914 = vrcp.pop %v897
        %v915 = vrcp.pop %v899
        %v916 = vmul.f32 %v837, %v900
        %v917 = vmul.f32 %v839, %v901
        %v918 = vmul.f32 %v841, %v902
        %v919 = vmul.f32 %v843, %v903
        %v920 = vmul.f32 %v845, %v904
        %v921 = vmul.f32 %v847, %v905
        %v922 = vmul.f32 %v849, %v906
        %v923 = vmul.f32 %v851, %v907
        %v924 = vmul.f32 %v853, %v908
        %v925 = vmul.f32 %v855, %v909
        %v926 = vmul.f32 %v857, %v910
        %v927 = vmul.f32 %v859, %v911
        %v928 = vmul.f32 %v861, %v912
        %v929 = vmul.f32 %v863, %v913
        %v930 = vmul.f32 %v865, %v914
        %v931 = vmul.f32 %v867, %v915
        %932 = vst [vmem:[%s280] sm:$0xff] %v916
        %933 = vst [vmem:[%s280 + $0x8] sm:$0xff] %v917
        %934 = vst [vmem:[%s280 + $0x10] sm:$0xff] %v918
        %935 = vst [vmem:[%s280 + $0x18] sm:$0xff] %v919
        %936 = vst [vmem:[%s280 + $0x20] sm:$0xff] %v920
        %937 = vst [vmem:[%s280 + $0x28] sm:$0xff] %v921
        %938 = vst [vmem:[%s280 + $0x30] sm:$0xff] %v922
        %939 = vst [vmem:[%s280 + $0x38] sm:$0xff] %v923
        %940 = vst [vmem:[%s280 + $0x40] sm:$0xff] %v924
        %941 = vst [vmem:[%s280 + $0x48] sm:$0xff] %v925
        %942 = vst [vmem:[%s280 + $0x50] sm:$0xff] %v926
        %943 = vst [vmem:[%s280 + $0x58] sm:$0xff] %v927
        %944 = vst [vmem:[%s280 + $0x60] sm:$0xff] %v928
        %945 = vst [vmem:[%s280 + $0x68] sm:$0xff] %v929
        %946 = vst [vmem:[%s280 + $0x70] sm:$0xff] %v930
        %947 = vst [vmem:[%s280 + $0x78] sm:$0xff] %v931
        %948 = vrot.lane.b32.xlu0 %v437, 64
        %v949 = vpop.permute.xlu0 %948
        %950 = vrot.lane.b32.xlu0 %v442, 64
        %v951 = vpop.permute.xlu0 %950
        %952 = vrot.lane.b32.xlu0 %v447, 64
        %v953 = vpop.permute.xlu0 %952
        %954 = vrot.lane.b32.xlu0 %v452, 64
        %v955 = vpop.permute.xlu0 %954
        %956 = vrot.lane.b32.xlu0 %v457, 64
        %v957 = vpop.permute.xlu0 %956
        %958 = vrot.lane.b32.xlu0 %v462, 64
        %v959 = vpop.permute.xlu0 %958
        %960 = vrot.lane.b32.xlu0 %v467, 64
        %v961 = vpop.permute.xlu0 %960
        %962 = vrot.lane.b32.xlu0 %v472, 64
        %v963 = vpop.permute.xlu0 %962
        %964 = vrot.lane.b32.xlu0 %v477, 64
        %v965 = vpop.permute.xlu0 %964
        %966 = vrot.lane.b32.xlu0 %v482, 64
        %v967 = vpop.permute.xlu0 %966
        %968 = vrot.lane.b32.xlu0 %v487, 64
        %v969 = vpop.permute.xlu0 %968
        %970 = vrot.lane.b32.xlu0 %v492, 64
        %v971 = vpop.permute.xlu0 %970
        %972 = vrot.lane.b32.xlu0 %v497, 64
        %v973 = vpop.permute.xlu0 %972
        %974 = vrot.lane.b32.xlu0 %v502, 64
        %v975 = vpop.permute.xlu0 %974
        %976 = vrot.lane.b32.xlu0 %v507, 64
        %v977 = vpop.permute.xlu0 %976
        %978 = vrot.lane.b32.xlu0 %v512, 64
        %v979 = vpop.permute.xlu0 %978
        %996 = vmatprep.subr.mxu0 0.0
        %997 = vmatpush1.msra.mxu0 %v949
        %998 = vmatprep.subr.mxu0 0.0
        %999 = vmatpush1.msra.mxu0 %v951
        %1000 = vmatprep.subr.mxu0 0.0
        %1001 = vmatpush1.msra.mxu0 %v953
        %1002 = vmatprep.subr.mxu0 0.0
        %1003 = vmatpush1.msra.mxu0 %v955
        %1004 = vmatprep.subr.mxu0 0.0
        %1005 = vmatpush1.msra.mxu0 %v957
        %1006 = vmatprep.subr.mxu0 0.0
        %1007 = vmatpush1.msra.mxu0 %v959
        %1008 = vmatprep.subr.mxu0 0.0
        %1009 = vmatpush1.msra.mxu0 %v961
        %1010 = vmatprep.subr.mxu0 0.0
        %1011 = vmatpush1.msra.mxu0 %v963
        %1012 = vmatprep.subr.mxu0 0.0
        %1013 = vmatpush1.msra.mxu0 %v965
        %1014 = vmatprep.subr.mxu0 0.0
        %1015 = vmatpush1.msra.mxu0 %v967
        %1016 = vmatprep.subr.mxu0 0.0
        %1017 = vmatpush1.msra.mxu0 %v969
        %1018 = vmatprep.subr.mxu0 0.0
        %1019 = vmatpush1.msra.mxu0 %v971
        %1020 = vmatprep.subr.mxu0 0.0
        %1021 = vmatpush1.msra.mxu0 %v973
        %1022 = vmatprep.subr.mxu0 0.0
        %1023 = vmatpush1.msra.mxu0 %v975
        %1024 = vmatprep.subr.mxu0 0.0
        %1025 = vmatpush1.msra.mxu0 %v977
        %1026 = vmatprep.subr.mxu0 0.0
        %1027 = vmatpush1.msra.mxu0 %v979
        %1028 = vmatprep.subr.mxu0 0.0
        %1029 = vmatpush1.msra.mxu0 0.0
        %1030 = vmatprep.subr.mxu0 0.0
        %1031 = vmatpush1.msra.mxu0 0.0
        %1032 = vmatprep.subr.mxu0 0.0
        %1033 = vmatpush1.msra.mxu0 0.0
        %1034 = vmatprep.subr.mxu0 0.0
        %1035 = vmatpush1.msra.mxu0 0.0
        %1036 = vmatprep.subr.mxu0 0.0
        %1037 = vmatpush1.msra.mxu0 0.0
        %1038 = vmatprep.subr.mxu0 0.0
        %1039 = vmatpush1.msra.mxu0 0.0
        %1040 = vmatprep.subr.mxu0 0.0
        %1041 = vmatpush1.msra.mxu0 0.0
        %1042 = vmatprep.subr.mxu0 0.0
        %1043 = vmatpush1.msra.mxu0 0.0
        %1044 = vmatprep.subr.mxu0 0.0
        %1045 = vmatpush1.msra.mxu0 0.0
        %1046 = vmatprep.subr.mxu0 0.0
        %1047 = vmatpush1.msra.mxu0 0.0
        %1048 = vmatprep.subr.mxu0 0.0
        %1049 = vmatpush1.msra.mxu0 0.0
        %1050 = vmatprep.subr.mxu0 0.0
        %1051 = vmatpush1.msra.mxu0 0.0
        %1052 = vmatprep.subr.mxu0 0.0
        %1053 = vmatpush1.msra.mxu0 0.0
        %1054 = vmatprep.subr.mxu0 0.0
        %1055 = vmatpush1.msra.mxu0 0.0
        %1056 = vmatprep.subr.mxu0 0.0
        %1057 = vmatpush1.msra.mxu0 0.0
        %1058 = vmatprep.subr.mxu0 0.0
        %1059 = vmatpush1.msra.mxu0 0.0
        %1060 = vmatprep.mubr.f32.mxu0 0.0
        %1061 = vmatmul.mubr.f32.gmra.mrb[0].mxu0 %v916
        %v1062 = vpop.f32.mrb[0].mxu0
        %v1063 = vadd.f32 0.0, %v1062
        %v1064 = vpop.f32.mrb[0].mxu0
        %1065 = vmatprep.mubr.f32.mxu0 0.0
        %1066 = vmatmul.mubr.f32.gmra.mrb[0].mxu0 %v917
        %v1067 = vpop.f32.mrb[0].mxu0
        %v1068 = vadd.f32 0.0, %v1067
        %v1069 = vpop.f32.mrb[0].mxu0
        %1070 = vmatprep.mubr.f32.mxu0 0.0
        %1071 = vmatmul.mubr.f32.gmra.mrb[0].mxu0 %v918
        %v1072 = vpop.f32.mrb[0].mxu0
        %v1073 = vadd.f32 0.0, %v1072
        %v1074 = vpop.f32.mrb[0].mxu0
        %1075 = vmatprep.mubr.f32.mxu0 0.0
        %1076 = vmatmul.mubr.f32.gmra.mrb[0].mxu0 %v919
        %v1077 = vpop.f32.mrb[0].mxu0
        %v1078 = vadd.f32 0.0, %v1077
        %v1079 = vpop.f32.mrb[0].mxu0
        %1080 = vmatprep.mubr.f32.mxu0 0.0
        %1081 = vmatmul.mubr.f32.gmra.mrb[0].mxu0 %v920
        %v1082 = vpop.f32.mrb[0].mxu0
        %v1083 = vadd.f32 0.0, %v1082
        %v1084 = vpop.f32.mrb[0].mxu0
        %1085 = vmatprep.mubr.f32.mxu0 0.0
        %1086 = vmatmul.mubr.f32.gmra.mrb[0].mxu0 %v921
        %v1087 = vpop.f32.mrb[0].mxu0
        %v1088 = vadd.f32 0.0, %v1087
        %v1089 = vpop.f32.mrb[0].mxu0
        %1090 = vmatprep.mubr.f32.mxu0 0.0
        %1091 = vmatmul.mubr.f32.gmra.mrb[0].mxu0 %v922
        %v1092 = vpop.f32.mrb[0].mxu0
        %v1093 = vadd.f32 0.0, %v1092
        %v1094 = vpop.f32.mrb[0].mxu0
        %1095 = vmatprep.mubr.f32.mxu0 0.0
        %1096 = vmatmul.mubr.f32.gmra.mrb[0].mxu0 %v923
        %v1097 = vpop.f32.mrb[0].mxu0
        %v1098 = vadd.f32 0.0, %v1097
        %v1099 = vpop.f32.mrb[0].mxu0
        %1100 = vmatprep.mubr.f32.mxu0 0.0
        %1101 = vmatmul.mubr.f32.gmra.mrb[0].mxu0 %v924
        %v1102 = vpop.f32.mrb[0].mxu0
        %v1103 = vadd.f32 0.0, %v1102
        %v1104 = vpop.f32.mrb[0].mxu0
        %1105 = vmatprep.mubr.f32.mxu0 0.0
        %1106 = vmatmul.mubr.f32.gmra.mrb[0].mxu0 %v925
        %v1107 = vpop.f32.mrb[0].mxu0
        %v1108 = vadd.f32 0.0, %v1107
        %v1109 = vpop.f32.mrb[0].mxu0
        %1110 = vmatprep.mubr.f32.mxu0 0.0
        %1111 = vmatmul.mubr.f32.gmra.mrb[0].mxu0 %v926
        %v1112 = vpop.f32.mrb[0].mxu0
        %v1113 = vadd.f32 0.0, %v1112
        %v1114 = vpop.f32.mrb[0].mxu0
        %1115 = vmatprep.mubr.f32.mxu0 0.0
        %1116 = vmatmul.mubr.f32.gmra.mrb[0].mxu0 %v927
        %v1117 = vpop.f32.mrb[0].mxu0
        %v1118 = vadd.f32 0.0, %v1117
        %v1119 = vpop.f32.mrb[0].mxu0
        %1120 = vmatprep.mubr.f32.mxu0 0.0
        %1121 = vmatmul.mubr.f32.gmra.mrb[0].mxu0 %v928
        %v1122 = vpop.f32.mrb[0].mxu0
        %v1123 = vadd.f32 0.0, %v1122
        %v1124 = vpop.f32.mrb[0].mxu0
        %1125 = vmatprep.mubr.f32.mxu0 0.0
        %1126 = vmatmul.mubr.f32.gmra.mrb[0].mxu0 %v929
        %v1127 = vpop.f32.mrb[0].mxu0
        %v1128 = vadd.f32 0.0, %v1127
        %v1129 = vpop.f32.mrb[0].mxu0
        %1130 = vmatprep.mubr.f32.mxu0 0.0
        %1131 = vmatmul.mubr.f32.gmra.mrb[0].mxu0 %v930
        %v1132 = vpop.f32.mrb[0].mxu0
        %v1133 = vadd.f32 0.0, %v1132
        %v1134 = vpop.f32.mrb[0].mxu0
        %1135 = vmatprep.mubr.f32.mxu0 0.0
        %1136 = vmatmul.mubr.f32.gmra.mrb[0].mxu0 %v931
        %v1137 = vpop.f32.mrb[0].mxu0
        %v1138 = vadd.f32 0.0, %v1137
        %v1139 = vpop.f32.mrb[0].mxu0
        %1140 = vdwg.mxu0
        %v1141 = vld [vmem:[%s3] sm:$0xff]
        %v1142 = vld [vmem:[%s3 + $0x8] sm:$0xff]
        %v1143 = vld [vmem:[%s3 + $0x10] sm:$0xff]
        %v1144 = vld [vmem:[%s3 + $0x18] sm:$0xff]
        %v1145 = vld [vmem:[%s4] sm:$0x1]
        %v1147 = vlaneseq
        %v1148 = vshrl.u32 %v1147, 7
        %v1149 = vsub.s32 0, %v1148
        %v1150 = vrot.slane %v1145, %v1149
        %v1153 = vsel %vm321, %v1063, 0
        %v1156 = vsel %vm321, %v1068, 0
        %v1159 = vsel %vm321, %v1073, 0
        %v1162 = vsel %vm321, %v1078, 0
        %v1165 = vsel %vm321, %v1083, 0
        %v1168 = vsel %vm321, %v1088, 0
        %v1171 = vsel %vm321, %v1093, 0
        %v1174 = vsel %vm321, %v1098, 0
        %v1177 = vsel %vm321, %v1103, 0
        %v1180 = vsel %vm321, %v1108, 0
        %v1183 = vsel %vm321, %v1113, 0
        %v1186 = vsel %vm321, %v1118, 0
        %v1189 = vsel %vm321, %v1123, 0
        %v1192 = vsel %vm321, %v1128, 0
        %v1195 = vsel %vm321, %v1133, 0
        %v1198 = vsel %vm321, %v1138, 0
        %1200 = vmatprep.subr.mxu0 0.0
        %1201 = vmatpush1.msra.mxu0 %v1141
        %1202 = vmatprep.subr.mxu0 0.0
        %1203 = vmatpush1.msra.mxu0 %v1142
        %1204 = vmatprep.subr.mxu0 0.0
        %1205 = vmatpush1.msra.mxu0 %v1143
        %1206 = vmatprep.subr.mxu0 0.0
        %1207 = vmatpush1.msra.mxu0 %v1144
        %1208 = vmatprep.subr.mxu0 0.0
        %1209 = vmatpush1.msra.mxu0 0.0
        %1210 = vmatprep.subr.mxu0 0.0
        %1211 = vmatpush1.msra.mxu0 0.0
        %1212 = vmatprep.subr.mxu0 0.0
        %1213 = vmatpush1.msra.mxu0 0.0
        %1214 = vmatprep.subr.mxu0 0.0
        %1215 = vmatpush1.msra.mxu0 0.0
        %1216 = vmatprep.subr.mxu0 0.0
        %1217 = vmatpush1.msra.mxu0 0.0
        %1218 = vmatprep.subr.mxu0 0.0
        %1219 = vmatpush1.msra.mxu0 0.0
        %1220 = vmatprep.subr.mxu0 0.0
        %1221 = vmatpush1.msra.mxu0 0.0
        %1222 = vmatprep.subr.mxu0 0.0
        %1223 = vmatpush1.msra.mxu0 0.0
        %1224 = vmatprep.subr.mxu0 0.0
        %1225 = vmatpush1.msra.mxu0 0.0
        %1226 = vmatprep.subr.mxu0 0.0
        %1227 = vmatpush1.msra.mxu0 0.0
        %1228 = vmatprep.subr.mxu0 0.0
        %1229 = vmatpush1.msra.mxu0 0.0
        %1230 = vmatprep.subr.mxu0 0.0
        %1231 = vmatpush1.msra.mxu0 0.0
        %1232 = vmatprep.subr.mxu0 0.0
        %1233 = vmatpush1.msra.mxu0 0.0
        %1234 = vmatprep.subr.mxu0 0.0
        %1235 = vmatpush1.msra.mxu0 0.0
        %1236 = vmatprep.subr.mxu0 0.0
        %1237 = vmatpush1.msra.mxu0 0.0
        %1238 = vmatprep.subr.mxu0 0.0
        %1239 = vmatpush1.msra.mxu0 0.0
        %1240 = vmatprep.subr.mxu0 0.0
        %1241 = vmatpush1.msra.mxu0 0.0
        %1242 = vmatprep.subr.mxu0 0.0
        %1243 = vmatpush1.msra.mxu0 0.0
        %1244 = vmatprep.subr.mxu0 0.0
        %1245 = vmatpush1.msra.mxu0 0.0
        %1246 = vmatprep.subr.mxu0 0.0
        %1247 = vmatpush1.msra.mxu0 0.0
        %1248 = vmatprep.subr.mxu0 0.0
        %1249 = vmatpush1.msra.mxu0 0.0
        %1250 = vmatprep.subr.mxu0 0.0
        %1251 = vmatpush1.msra.mxu0 0.0
        %1252 = vmatprep.subr.mxu0 0.0
        %1253 = vmatpush1.msra.mxu0 0.0
        %1254 = vmatprep.subr.mxu0 0.0
        %1255 = vmatpush1.msra.mxu0 0.0
        %1256 = vmatprep.subr.mxu0 0.0
        %1257 = vmatpush1.msra.mxu0 0.0
        %1258 = vmatprep.subr.mxu0 0.0
        %1259 = vmatpush1.msra.mxu0 0.0
        %1260 = vmatprep.subr.mxu0 0.0
        %1261 = vmatpush1.msra.mxu0 0.0
        %1262 = vmatprep.subr.mxu0 0.0
        %1263 = vmatpush1.msra.mxu0 0.0
        %1264 = vmatprep.mubr.f32.mxu0 0.0
        %1265 = vmatmul.mubr.f32.gmra.mrb[0].mxu0 %v1153
        %v1266 = vpop.f32.mrb[0].mxu0
        %v1267 = vadd.f32 %v1150, %v1266
        %v1268 = vpop.f32.mrb[0].mxu0
        %1269 = vmatprep.mubr.f32.mxu0 0.0
        %1270 = vmatmul.mubr.f32.gmra.mrb[0].mxu0 %v1156
        %v1271 = vpop.f32.mrb[0].mxu0
        %v1272 = vadd.f32 %v1150, %v1271
        %v1273 = vpop.f32.mrb[0].mxu0
        %1274 = vmatprep.mubr.f32.mxu0 0.0
        %1275 = vmatmul.mubr.f32.gmra.mrb[0].mxu0 %v1159
        %v1276 = vpop.f32.mrb[0].mxu0
        %v1277 = vadd.f32 %v1150, %v1276
        %v1278 = vpop.f32.mrb[0].mxu0
        %1279 = vmatprep.mubr.f32.mxu0 0.0
        %1280 = vmatmul.mubr.f32.gmra.mrb[0].mxu0 %v1162
        %v1281 = vpop.f32.mrb[0].mxu0
        %v1282 = vadd.f32 %v1150, %v1281
        %v1283 = vpop.f32.mrb[0].mxu0
        %1284 = vmatprep.mubr.f32.mxu0 0.0
        %1285 = vmatmul.mubr.f32.gmra.mrb[0].mxu0 %v1165
        %v1286 = vpop.f32.mrb[0].mxu0
        %v1287 = vadd.f32 %v1150, %v1286
        %v1288 = vpop.f32.mrb[0].mxu0
        %1289 = vmatprep.mubr.f32.mxu0 0.0
        %1290 = vmatmul.mubr.f32.gmra.mrb[0].mxu0 %v1168
        %v1291 = vpop.f32.mrb[0].mxu0
        %v1292 = vadd.f32 %v1150, %v1291
        %v1293 = vpop.f32.mrb[0].mxu0
        %1294 = vmatprep.mubr.f32.mxu0 0.0
        %1295 = vmatmul.mubr.f32.gmra.mrb[0].mxu0 %v1171
        %v1296 = vpop.f32.mrb[0].mxu0
        %v1297 = vadd.f32 %v1150, %v1296
        %v1298 = vpop.f32.mrb[0].mxu0
        %1299 = vmatprep.mubr.f32.mxu0 0.0
        %1300 = vmatmul.mubr.f32.gmra.mrb[0].mxu0 %v1174
        %v1301 = vpop.f32.mrb[0].mxu0
        %v1302 = vadd.f32 %v1150, %v1301
        %v1303 = vpop.f32.mrb[0].mxu0
        %1304 = vmatprep.mubr.f32.mxu0 0.0
        %1305 = vmatmul.mubr.f32.gmra.mrb[0].mxu0 %v1177
        %v1306 = vpop.f32.mrb[0].mxu0
        %v1307 = vadd.f32 %v1150, %v1306
        %v1308 = vpop.f32.mrb[0].mxu0
        %1309 = vmatprep.mubr.f32.mxu0 0.0
        %1310 = vmatmul.mubr.f32.gmra.mrb[0].mxu0 %v1180
        %v1311 = vpop.f32.mrb[0].mxu0
        %v1312 = vadd.f32 %v1150, %v1311
        %v1313 = vpop.f32.mrb[0].mxu0
        %1314 = vmatprep.mubr.f32.mxu0 0.0
        %1315 = vmatmul.mubr.f32.gmra.mrb[0].mxu0 %v1183
        %v1316 = vpop.f32.mrb[0].mxu0
        %v1317 = vadd.f32 %v1150, %v1316
        %v1318 = vpop.f32.mrb[0].mxu0
        %1319 = vmatprep.mubr.f32.mxu0 0.0
        %1320 = vmatmul.mubr.f32.gmra.mrb[0].mxu0 %v1186
        %v1321 = vpop.f32.mrb[0].mxu0
        %v1322 = vadd.f32 %v1150, %v1321
        %v1323 = vpop.f32.mrb[0].mxu0
        %1324 = vmatprep.mubr.f32.mxu0 0.0
        %1325 = vmatmul.mubr.f32.gmra.mrb[0].mxu0 %v1189
        %v1326 = vpop.f32.mrb[0].mxu0
        %v1327 = vadd.f32 %v1150, %v1326
        %v1328 = vpop.f32.mrb[0].mxu0
        %1329 = vmatprep.mubr.f32.mxu0 0.0
        %1330 = vmatmul.mubr.f32.gmra.mrb[0].mxu0 %v1192
        %v1331 = vpop.f32.mrb[0].mxu0
        %v1332 = vadd.f32 %v1150, %v1331
        %v1333 = vpop.f32.mrb[0].mxu0
        %1334 = vmatprep.mubr.f32.mxu0 0.0
        %1335 = vmatmul.mubr.f32.gmra.mrb[0].mxu0 %v1195
        %v1336 = vpop.f32.mrb[0].mxu0
        %v1337 = vadd.f32 %v1150, %v1336
        %v1338 = vpop.f32.mrb[0].mxu0
        %1339 = vmatprep.mubr.f32.mxu0 0.0
        %1340 = vmatmul.mubr.f32.gmra.mrb[0].mxu0 %v1198
        %v1341 = vpop.f32.mrb[0].mxu0
        %v1342 = vadd.f32 %v1150, %v1341
        %v1343 = vpop.f32.mrb[0].mxu0
        %1344 = vdwg.mxu0
        %1345 = vst.msk [vmem:[%s291] sm:$0xff] %vm321, %v1267
        %1346 = vst.msk [vmem:[%s291 + $0x8] sm:$0xff] %vm321, %v1272
        %1347 = vst.msk [vmem:[%s291 + $0x10] sm:$0xff] %vm321, %v1277
        %1348 = vst.msk [vmem:[%s291 + $0x18] sm:$0xff] %vm321, %v1282
        %1349 = vst.msk [vmem:[%s291 + $0x20] sm:$0xff] %vm321, %v1287
        %1350 = vst.msk [vmem:[%s291 + $0x28] sm:$0xff] %vm321, %v1292
        %1351 = vst.msk [vmem:[%s291 + $0x30] sm:$0xff] %vm321, %v1297
        %1352 = vst.msk [vmem:[%s291 + $0x38] sm:$0xff] %vm321, %v1302
        %1353 = vst.msk [vmem:[%s291 + $0x40] sm:$0xff] %vm321, %v1307
        %1354 = vst.msk [vmem:[%s291 + $0x48] sm:$0xff] %vm321, %v1312
        %1355 = vst.msk [vmem:[%s291 + $0x50] sm:$0xff] %vm321, %v1317
        %1356 = vst.msk [vmem:[%s291 + $0x58] sm:$0xff] %vm321, %v1322
        %1357 = vst.msk [vmem:[%s291 + $0x60] sm:$0xff] %vm321, %v1327
        %1358 = vst.msk [vmem:[%s291 + $0x68] sm:$0xff] %vm321, %v1332
        %1359 = vst.msk [vmem:[%s291 + $0x70] sm:$0xff] %vm321, %v1337
        %1360 = vst.msk [vmem:[%s291 + $0x78] sm:$0xff] %vm321, %v1342
        %s1361 = smul.u32 16, %s22
        %p1362 = scmp.lt.s32.totalorder %s1361, 31
        %s1363 = scalar_select %p1362, %s1361, 31
        %s1364 = smul.addr %s1363, 8
        %s1365 = scalar_lea.vmem %s6, %s1364
        %s1366 = sand.u32 %s187, 1
        %s1367 = scalar_lea.sflag [#allocation3], %s1366
        %s1368 = sand.u32 %s187, 1
        %s1369 = smul.addr %s1368, 128
        %s1370 = scalar_lea.vmem [#allocation2], %s1369
        // Predicated region
        $region45: #{tpu_custom_call.1} parent=43 // pred_check
          %p1371 = pneg %p171
        $region46: #{tpu_custom_call.1} parent=43 // pred_check_branch
          %1373 = sbr.rel (%p1371) target = $region48
        $region47: #{tpu_custom_call.1} parent=43 // pred_region
          %s1374 = smul.u32 16, %s22
        $region48: #{tpu_custom_call.1} parent=43 // pred_fallthru
          _
        // Predicated region
        $region49: #{tpu_custom_call.1} parent=43 // pred_check
          %p1375 = pneg %p197
        $region50: #{tpu_custom_call.1} parent=43 // pred_check_branch
          %1377 = sbr.rel (%p1375) target = $region52
        $region51: #{tpu_custom_call.1} parent=43 // pred_region
          %s1378 = smul.u32 16, %s22
          %s1380 = ssub.s32 2048, 2048
          %1381 = vsyncadd %s1367, %s1380
          %s1382 = smul.addr %s1378, 128
          %s1383 = scalar_lea.hbm %s7, %s1382
          %s1384 = sshll.u32 %s1370, 4
          %s1385 = int_to_ptr.vmem [resolvable:$true] %s1384
          %1390 = dma.vmem_to_hbm [thread:$0]  %s1385, 2048, %s1383, %s1367, 128, 128, 8
        $region52: #{tpu_custom_call.1} parent=43 // pred_fallthru
          _
      $region44: #{tpu_custom_call.1} parent=5 // pred_fallthru
        _
      %p1391 = scmp.le.s32.totalorder 2, %s17
      // Predicated region
      $region53: #{tpu_custom_call.1} parent=5 // pred_check
        %p1392 = pneg %p1391
      $region54: #{tpu_custom_call.1} parent=5 // pred_check_branch
        %1394 = sbr.rel (%p1392) target = $region56
      $region55: #{tpu_custom_call.1} parent=5 // pred_region
        %s1395 = ssub.s32 %s17, 2
        // Predicated region
        $region57: #{tpu_custom_call.1} parent=55 // pred_check
          %p1396 = pneg %p177
        $region58: #{tpu_custom_call.1} parent=55 // pred_check_branch
          %1398 = sbr.rel (%p1396) target = $region60
        $region59: #{tpu_custom_call.1} parent=55 // pred_region
          %s1399 = smul.u32 16, %s23
          %p1400 = scmp.lt.s32.totalorder %s1399, 31
          %s1401 = scalar_select %p1400, %s1399, 31
          %s1402 = smul.addr %s1401, 8
          %s1403 = scalar_lea.vmem %s6, %s1402
        $region60: #{tpu_custom_call.1} parent=55 // pred_fallthru
          _
        // Predicated region
        $region61: #{tpu_custom_call.1} parent=55 // pred_check
          %p1404 = pneg %p203
        $region62: #{tpu_custom_call.1} parent=55 // pred_check_branch
          %1406 = sbr.rel (%p1404) target = $region64
        $region63: #{tpu_custom_call.1} parent=55 // pred_region
          %s1407 = sand.u32 %s188, 1
          %s1408 = scalar_lea.sflag [#allocation3], %s1407
          %s1409 = sand.u32 %s188, 1
          %s1410 = smul.addr %s1409, 128
          %s1411 = scalar_lea.vmem [#allocation2], %s1410
          %1412 = dma.done %s1408, 2048
        $region64: #{tpu_custom_call.1} parent=55 // pred_fallthru
          _
      $region56: #{tpu_custom_call.1} parent=5 // pred_fallthru
        _
    $region6: #{tpu_custom_call.1} parent=1 // loop_footer
      %s21 = sadd.s32 1, %s17
    $region7: #{tpu_custom_call.1} parent=1 // loop_footer_branch
      %16 = sbr.rel target = $region3
    $region8: #{tpu_custom_call.1} parent=1 // loop_exit
      _
    %1413 = vsyncpa [#allocation3], 1
    %s1414 = scalar_lea.sflag [#allocation3], 1
    %1415 = vsyncpa %s1414, 1

</llo_original>
